<compile_context>
chip_gen: v5e
topology: v5e:2x2
jax: 0.10.0
libtpu: 0.0.40
codegen_flags: <defaults>
</compile_context>

<pallas_src>
import math
import functools

import jax
import jax.numpy as jnp
from jax.experimental import pallas as pl
from jax.experimental.pallas import tpu as pltpu

MAX_LEN = 256
ROPE_BASE = 10.0  # RoPE passes base=10.0 to PositionalEmbedding


def _attention_kernel(x_ref, wf_ref, wo_ref, sin_ref, cos_ref, mask_ref,
                      o_ref, attn_ref, *, n_heads, head_dim):
    """One grid step == one batch chunk. Refs:
        x_ref    : (Bb, T, C)    input chunk (compute dtype: f32 or bf16)
        wf_ref   : (C, 5C)       fused [Wq | Wk | Wv | roll(Wq) | roll(Wk)]
        wo_ref   : (C, C)        output projection
        sin_ref  : (Bb*T, C)     RoPE [-sin, sin] table, tiled over Bb
        cos_ref  : (Bb*T, C)     RoPE [ cos, cos] table, tiled over Bb
        mask_ref : (T, T)        additive attention mask (f32)
        o_ref    : (Bb, T, C)    output chunk (f32)
        attn_ref : (Bb, T, C)    f32 VMEM scratch (per-head output assembly)
    """
    Bb, T, C = x_ref.shape
    BbT = Bb * T
    cdt = x_ref.dtype                       # matmul input dtype (f32 / bf16)

    # ---- fused QKV (+ pre-rolled q/k) projection: one MXU pass, f32 acc ----
    x2 = x_ref[...].reshape(BbT, C)
    qkv = jnp.dot(x2, wf_ref[...], preferred_element_type=jnp.float32)  # (BbT, 5C)

    q  = qkv[:, 0 * C:1 * C]
    k  = qkv[:, 1 * C:2 * C]
    v  = qkv[:, 2 * C:3 * C]
    qr = qkv[:, 3 * C:4 * C]     # == roll(q, C//2, axis=-1) via rolled weights
    kr = qkv[:, 4 * C:5 * C]     # == roll(k, C//2, axis=-1)

    cosf = cos_ref[...]          # (BbT, C)
    sinf = sin_ref[...]          # (BbT, C), already sign-adjusted

    # Full-width RoPE, pure elementwise (no slice/concat/relayout), f32.
    q = q * cosf + qr * sinf
    k = k * cosf + kr * sinf

    qc = q.reshape(Bb, T, C).astype(cdt)
    kc = k.reshape(Bb, T, C).astype(cdt)
    vc = v.reshape(Bb, T, C).astype(cdt)

    mask = mask_ref[...]                    # (T, T)
    scale = 1.0 / math.sqrt(head_dim)

    # Per-head attention, batched over the local batch dim with dot_general
    # (no explicit transposes, no concatenate).  Softmax math stays f32.
    for h in range(n_heads):                # small static unroll (H=4)
        lo = h * head_dim
        hi = lo + head_dim
        qh = qc[:, :, lo:hi]                # (Bb, T, hd)
        kh = kc[:, :, lo:hi]
        vh = vc[:, :, lo:hi]
        s = jnp.einsum('bqd,bkd->bqk', qh, kh,
                       preferred_element_type=jnp.float32) * scale
        s = s + mask[None, :, :]
        s = s - jnp.max(s, axis=-1, keepdims=True)      # stable softmax
        p = jnp.exp(s)
        p = p * pl.reciprocal(jnp.sum(p, axis=-1, keepdims=True), approx=True)
        attn_ref[:, :, lo:hi] = jnp.einsum(
            'bqk,bkd->bqd', p.astype(cdt), vh,
            preferred_element_type=jnp.float32)

    # ---- output projection ----
    attn = attn_ref[...].reshape(BbT, C).astype(cdt)
    out = jnp.dot(attn, wo_ref[...], preferred_element_type=jnp.float32)
    o_ref[...] = out.reshape(Bb, T, C).astype(o_ref.dtype)


def make_rope_tables(dim, T, base=ROPE_BASE, dtype=jnp.float32):
    """PositionalEmbedding: pe[:,0::2]=sin(pos*div), pe[:,1::2]=cos(pos*div).
    RoPE then reads sin = pe[:,0::2], cos = pe[:,1::2]."""
    pos = jnp.arange(T, dtype=jnp.float32)[:, None]                  # (T, 1)
    div = jnp.exp(-math.log(base) *
                  jnp.arange(0, dim, 2, dtype=jnp.float32) / dim)    # (dim//2,)
    ang = pos * div[None, :]                                         # (T, dim//2)
    return jnp.sin(ang).astype(dtype), jnp.cos(ang).astype(dtype)


def attention_pallas(x, wq, wk, wv, wo, mask, *, n_heads,
                     compute_dtype=jnp.float32, batch_blocks=1):
    """x: (B, T, C); w*: (C, C) in (in, out) layout; mask: (T, T) additive or None.

    compute_dtype: dtype fed to the MXU (f32, or bf16 on v6e/v7x); all
                   accumulation / RoPE / softmax math stays f32.
    batch_blocks : number of grid steps over the batch.  1 => fully collapsed
                   (best for single-TC v5e/v6e); 2 => size-2 parallel axis to
                   feed both v7x TensorCores.
    """
    B, T, C = x.shape
    assert C % n_heads == 0 and B % batch_blocks == 0
    head_dim = C // n_heads
    half = C // 2
    Bb = B // batch_blocks

    if mask is None:
        mask = jnp.zeros((T, T), dtype=jnp.float32)
    mask = mask.astype(jnp.float32)

    # Fused weight: [Wq | Wk | Wv | roll(Wq) | roll(Wk)]  -> (C, 5C).
    # x @ roll(W, half, axis=1) == roll(x @ W, half, axis=-1), i.e. the MXU
    # produces RoPE's rotate-half for free (no XLU roll / slice+concat).
    w_fused = jnp.concatenate(
        [wq, wk, wv,
         jnp.roll(wq, half, axis=1),
         jnp.roll(wk, half, axis=1)], axis=1).astype(compute_dtype)
    wo_c = wo.astype(compute_dtype)
    x_c = x.astype(compute_dtype)

    sin, cos = make_rope_tables(C, T)                       # (T, C//2) each
    cos_full = jnp.concatenate([cos, cos], axis=1)          # (T, C)
    sin_signed = jnp.concatenate([-sin, sin], axis=1)       # (T, C)
    cos_full = jnp.tile(cos_full, (Bb, 1)).astype(jnp.float32)     # (Bb*T, C)
    sin_signed = jnp.tile(sin_signed, (Bb, 1)).astype(jnp.float32)

    kernel = functools.partial(_attention_kernel,
                               n_heads=n_heads, head_dim=head_dim)

    full2d = lambda shape: pl.BlockSpec(shape, lambda i: (0, 0))

    return pl.pallas_call(
        kernel,
        out_shape=jax.ShapeDtypeStruct((B, T, C), jnp.float32),
        grid_spec=pltpu.PrefetchScalarGridSpec(
            num_scalar_prefetch=0,
            grid=(batch_blocks,),
            in_specs=[
                pl.BlockSpec((Bb, T, C), lambda i: (i, 0, 0)),   # x chunk
                full2d((C, 5 * C)),                              # fused W
                full2d((C, C)),                                  # Wo
                full2d((Bb * T, C)),                             # [-sin, sin]
                full2d((Bb * T, C)),                             # [cos, cos]
                full2d((T, T)),                                  # mask
            ],
            out_specs=pl.BlockSpec((Bb, T, C), lambda i: (i, 0, 0)),
            scratch_shapes=[pltpu.VMEM((Bb, T, C), jnp.float32)],
        ),
        compiler_params=pltpu.CompilerParams(
            dimension_semantics=("parallel",)),
    )(x_c, w_fused, wo_c, sin_signed, cos_full, mask)


def attention_reference(x, wq, wk, wv, wo, mask, *, n_heads):
    """Pure-JAX reference mirroring the PyTorch forward semantics."""
    B, T, C = x.shape
    hd = C // n_heads
    sin_t, cos_t = make_rope_tables(C, T)

    def rope(t):
        t1, t2 = t[..., :C // 2], t[..., C // 2:]
        return jnp.concatenate([t1 * cos_t - t2 * sin_t,
                                t1 * sin_t + t2 * cos_t], axis=-1)

    q = rope(x @ wq)
    k = rope(x @ wk)
    v = x @ wv
    q = q.reshape(B, T, n_heads, hd).transpose(0, 2, 1, 3)
    k = k.reshape(B, T, n_heads, hd).transpose(0, 2, 1, 3)
    v = v.reshape(B, T, n_heads, hd).transpose(0, 2, 1, 3)
    scores = jnp.einsum("bhtd,bhsd->bhts", q, k) / math.sqrt(hd)
    if mask is not None:
        scores = scores + mask[None, None]
    p = jax.nn.softmax(scores, axis=-1)
    out = jnp.einsum("bhts,bhsd->bhtd", p, v)
    out = out.transpose(0, 2, 1, 3).reshape(B, T, C)
    return out @ wo


if __name__ == "__main__":
    # Small shapes consistent with the module: (B, T, C) = (2, 8, 32), 4 heads.
    B, T, C, H = 2, 8, 32, 4
    key = jax.random.PRNGKey(0)
    kx, kq, kk, kv, ko = jax.random.split(key, 5)

    x = jax.random.normal(kx, (B, T, C), dtype=jnp.float32)
    # Deterministic "Linear" weights, stored as (in, out) = W.T of nn.Linear.
    wq = 0.02 * jax.random.normal(kq, (C, C), dtype=jnp.float32)
    wk = 0.02 * jax.random.normal(kk, (C, C), dtype=jnp.float32)
    wv = 0.02 * jax.random.normal(kv, (C, C), dtype=jnp.float32)
    wo = 0.02 * jax.random.normal(ko, (C, C), dtype=jnp.float32)

    # Causal additive mask (exercises the `mask is not None` branch).
    mask = jnp.where(jnp.tril(jnp.ones((T, T), dtype=bool)), 0.0, -1e9)
    mask = mask.astype(jnp.float32)

    ref = attention_reference(x, wq, wk, wv, wo, mask, n_heads=H)

    # f32 matmul path, fully collapsed batch grid (single-TC v5e/v6e config).
    # Tolerance 2e-3 accommodates the EUP approximate reciprocal in softmax.
    out = attention_pallas(x, wq, wk, wv, wo, mask, n_heads=H)
    out = jax.block_until_ready(out)
    assert out.shape == (B, T, C)
    assert jnp.allclose(out, ref, atol=2e-3, rtol=2e-3), \
        f"f32 max err {jnp.max(jnp.abs(out - ref))}"

    # bf16 MXU path + 2-way parallel batch grid (v6e/v7x config; feeds both
    # v7x TensorCores).  Looser tolerance for bf16 matmul inputs.
    out_bf16 = attention_pallas(x, wq, wk, wv, wo, mask, n_heads=H,
                                compute_dtype=jnp.bfloat16, batch_blocks=2)
    out_bf16 = jax.block_until_ready(out_bf16)
    assert jnp.allclose(out_bf16, ref, atol=2e-2, rtol=2e-2), \
        f"bf16 max err {jnp.max(jnp.abs(out_bf16 - ref))}"

    print("KERNEL_OK")
</pallas_src>

<mosaic_0001>
module attributes {stable_mosaic.version = 11 : i64} {
  func.func @_attention_kernel(%arg0: i32, %arg1: memref<2x8x32xf32, #tpu.memory_space<vmem>>, %arg2: memref<32x160xf32, #tpu.memory_space<vmem>>, %arg3: memref<32x32xf32, #tpu.memory_space<vmem>>, %arg4: memref<16x32xf32, #tpu.memory_space<vmem>>, %arg5: memref<16x32xf32, #tpu.memory_space<vmem>>, %arg6: memref<8x8xf32, #tpu.memory_space<vmem>>, %arg7: memref<2x8x32xf32, #tpu.memory_space<vmem>>, %arg8: memref<2x8x32xf32, #tpu.memory_space<vmem>>) attributes {dimension_semantics = [#tpu.dimension_semantics<parallel>], iteration_bounds = array<i64: 1>, scalar_prefetch = 0 : i64, scratch_operands = 1 : i64, tpu.core_type = #tpu.core_type<tc>, window_params = [{transform_indices = @transform_0, window_bounds = array<i64: 2, 8, 32>}, {pipeline_mode = #tpu.pipeline_mode<synchronous>, transform_indices = @transform_1, window_bounds = array<i64: 32, 160>}, {pipeline_mode = #tpu.pipeline_mode<synchronous>, transform_indices = @transform_2, window_bounds = array<i64: 32, 32>}, {pipeline_mode = #tpu.pipeline_mode<synchronous>, transform_indices = @transform_3, window_bounds = array<i64: 16, 32>}, {pipeline_mode = #tpu.pipeline_mode<synchronous>, transform_indices = @transform_4, window_bounds = array<i64: 16, 32>}, {pipeline_mode = #tpu.pipeline_mode<synchronous>, transform_indices = @transform_5, window_bounds = array<i64: 8, 8>}, {transform_indices = @transform_6, window_bounds = array<i64: 2, 8, 32>}]} {
    %c0 = arith.constant 0 : index
    %c0_0 = arith.constant 0 : index
    %c0_1 = arith.constant 0 : index
    %0 = vector.load %arg1[%c0, %c0_0, %c0_1] : memref<2x8x32xf32, #tpu.memory_space<vmem>>, vector<2x8x32xf32>
    %1 = vector.shape_cast %0 : vector<2x8x32xf32> to vector<16x32xf32>
    %c0_2 = arith.constant 0 : index
    %c0_3 = arith.constant 0 : index
    %2 = vector.load %arg2[%c0_2, %c0_3] : memref<32x160xf32, #tpu.memory_space<vmem>>, vector<32x160xf32>
    %cst = arith.constant dense<0.000000e+00> : vector<16x160xf32>
    %3 = tpu.matmul %1, %2, %cst {dimension_numbers = #tpu.dot_dimension_numbers<[1], [0], [0], [1], [0, 0, 1, 1], [], []>} : vector<16x32xf32>, vector<32x160xf32>, vector<16x160xf32> -> vector<16x160xf32>
    %4 = vector.extract_strided_slice %3 {offsets = [0, 0], sizes = [16, 32], strides = [1, 1]} : vector<16x160xf32> to vector<16x32xf32>
    %5 = vector.extract_strided_slice %3 {offsets = [0, 32], sizes = [16, 32], strides = [1, 1]} : vector<16x160xf32> to vector<16x32xf32>
    %6 = vector.extract_strided_slice %3 {offsets = [0, 64], sizes = [16, 32], strides = [1, 1]} : vector<16x160xf32> to vector<16x32xf32>
    %7 = vector.extract_strided_slice %3 {offsets = [0, 96], sizes = [16, 32], strides = [1, 1]} : vector<16x160xf32> to vector<16x32xf32>
    %8 = vector.extract_strided_slice %3 {offsets = [0, 128], sizes = [16, 32], strides = [1, 1]} : vector<16x160xf32> to vector<16x32xf32>
    %c0_4 = arith.constant 0 : index
    %c0_5 = arith.constant 0 : index
    %9 = vector.load %arg5[%c0_4, %c0_5] : memref<16x32xf32, #tpu.memory_space<vmem>>, vector<16x32xf32>
    %c0_6 = arith.constant 0 : index
    %c0_7 = arith.constant 0 : index
    %10 = vector.load %arg4[%c0_6, %c0_7] : memref<16x32xf32, #tpu.memory_space<vmem>>, vector<16x32xf32>
    %11 = arith.mulf %4, %9 : vector<16x32xf32>
    %12 = arith.mulf %7, %10 : vector<16x32xf32>
    %13 = arith.addf %11, %12 : vector<16x32xf32>
    %14 = arith.mulf %5, %9 : vector<16x32xf32>
    %15 = arith.mulf %8, %10 : vector<16x32xf32>
    %16 = arith.addf %14, %15 : vector<16x32xf32>
    %17 = vector.shape_cast %13 : vector<16x32xf32> to vector<2x8x32xf32>
    %18 = vector.shape_cast %16 : vector<16x32xf32> to vector<2x8x32xf32>
    %19 = vector.shape_cast %6 : vector<16x32xf32> to vector<2x8x32xf32>
    %c0_8 = arith.constant 0 : index
    %c0_9 = arith.constant 0 : index
    %20 = vector.load %arg6[%c0_8, %c0_9] : memref<8x8xf32, #tpu.memory_space<vmem>>, vector<8x8xf32>
    %21 = vector.extract_strided_slice %17 {offsets = [0, 0, 0], sizes = [2, 8, 8], strides = [1, 1, 1]} : vector<2x8x32xf32> to vector<2x8x8xf32>
    %22 = vector.extract_strided_slice %18 {offsets = [0, 0, 0], sizes = [2, 8, 8], strides = [1, 1, 1]} : vector<2x8x32xf32> to vector<2x8x8xf32>
    %23 = vector.extract_strided_slice %19 {offsets = [0, 0, 0], sizes = [2, 8, 8], strides = [1, 1, 1]} : vector<2x8x32xf32> to vector<2x8x8xf32>
    "tpu.trace_start"() <{level = 10 : i32, message = "bqd,bkd->bqk"}> : () -> ()
    %cst_10 = arith.constant dense<0.000000e+00> : vector<2x8x8xf32>
    %24 = tpu.matmul %21, %22, %cst_10 {dimension_numbers = #tpu.dot_dimension_numbers<[2], [2], [1], [1], [0, 0, 0, 1, 1, 1], [0], [0]>} : vector<2x8x8xf32>, vector<2x8x8xf32>, vector<2x8x8xf32> -> vector<2x8x8xf32>
    "tpu.trace_stop"() : () -> ()
    %cst_11 = arith.constant 0.353553385 : f32
    %25 = vector.broadcast %cst_11 : f32 to vector<2x8x8xf32>
    %26 = arith.mulf %24, %25 : vector<2x8x8xf32>
    %27 = vector.shape_cast %20 : vector<8x8xf32> to vector<1x8x8xf32>
    %28 = vector.broadcast %27 : vector<1x8x8xf32> to vector<2x8x8xf32>
    %29 = arith.addf %26, %28 : vector<2x8x8xf32>
    %cst_12 = arith.constant dense<0xFF800000> : vector<2x8xf32>
    %30 = vector.multi_reduction <maximumf>, %29, %cst_12 [2] : vector<2x8x8xf32> to vector<2x8xf32>
    %31 = vector.shape_cast %30 : vector<2x8xf32> to vector<2x8x1xf32>
    %32 = vector.broadcast %31 : vector<2x8x1xf32> to vector<2x8x8xf32>
    %33 = arith.subf %29, %32 : vector<2x8x8xf32>
    %34 = math.exp %33 : vector<2x8x8xf32>
    %cst_13 = arith.constant dense<0.000000e+00> : vector<2x8xf32>
    %35 = vector.multi_reduction <add>, %34, %cst_13 [2] : vector<2x8x8xf32> to vector<2x8xf32>
    %36 = vector.shape_cast %35 : vector<2x8xf32> to vector<2x8x1xf32>
    %37 = tpu.reciprocal %36 {approx = true} : vector<2x8x1xf32> -> vector<2x8x1xf32>
    %38 = vector.broadcast %37 : vector<2x8x1xf32> to vector<2x8x8xf32>
    %39 = arith.mulf %34, %38 : vector<2x8x8xf32>
    "tpu.trace_start"() <{level = 10 : i32, message = "bqk,bkd->bqd"}> : () -> ()
    %cst_14 = arith.constant dense<0.000000e+00> : vector<2x8x8xf32>
    %40 = tpu.matmul %39, %23, %cst_14 {dimension_numbers = #tpu.dot_dimension_numbers<[2], [1], [1], [2], [0, 0, 0, 1, 1, 2], [0], [0]>} : vector<2x8x8xf32>, vector<2x8x8xf32>, vector<2x8x8xf32> -> vector<2x8x8xf32>
    "tpu.trace_stop"() : () -> ()
    %c0_15 = arith.constant 0 : index
    %c0_16 = arith.constant 0 : index
    %c0_17 = arith.constant 0 : index
    %41 = vector.load %arg8[%c0_15, %c0_16, %c0_17] : memref<2x8x32xf32, #tpu.memory_space<vmem>>, vector<2x8x8xf32>
    tpu.vector_store %arg8[%c0_15, %c0_16, %c0_17], %40 {strides = array<i32>} : memref<2x8x32xf32, #tpu.memory_space<vmem>>, vector<2x8x8xf32>,
    %42 = vector.extract_strided_slice %17 {offsets = [0, 0, 8], sizes = [2, 8, 8], strides = [1, 1, 1]} : vector<2x8x32xf32> to vector<2x8x8xf32>
    %43 = vector.extract_strided_slice %18 {offsets = [0, 0, 8], sizes = [2, 8, 8], strides = [1, 1, 1]} : vector<2x8x32xf32> to vector<2x8x8xf32>
    %44 = vector.extract_strided_slice %19 {offsets = [0, 0, 8], sizes = [2, 8, 8], strides = [1, 1, 1]} : vector<2x8x32xf32> to vector<2x8x8xf32>
    "tpu.trace_start"() <{level = 10 : i32, message = "bqd,bkd->bqk"}> : () -> ()
    %cst_18 = arith.constant dense<0.000000e+00> : vector<2x8x8xf32>
    %45 = tpu.matmul %42, %43, %cst_18 {dimension_numbers = #tpu.dot_dimension_numbers<[2], [2], [1], [1], [0, 0, 0, 1, 1, 1], [0], [0]>} : vector<2x8x8xf32>, vector<2x8x8xf32>, vector<2x8x8xf32> -> vector<2x8x8xf32>
    "tpu.trace_stop"() : () -> ()
    %cst_19 = arith.constant 0.353553385 : f32
    %46 = vector.broadcast %cst_19 : f32 to vector<2x8x8xf32>
    %47 = arith.mulf %45, %46 : vector<2x8x8xf32>
    %48 = vector.shape_cast %20 : vector<8x8xf32> to vector<1x8x8xf32>
    %49 = vector.broadcast %48 : vector<1x8x8xf32> to vector<2x8x8xf32>
    %50 = arith.addf %47, %49 : vector<2x8x8xf32>
    %cst_20 = arith.constant dense<0xFF800000> : vector<2x8xf32>
    %51 = vector.multi_reduction <maximumf>, %50, %cst_20 [2] : vector<2x8x8xf32> to vector<2x8xf32>
    %52 = vector.shape_cast %51 : vector<2x8xf32> to vector<2x8x1xf32>
    %53 = vector.broadcast %52 : vector<2x8x1xf32> to vector<2x8x8xf32>
    %54 = arith.subf %50, %53 : vector<2x8x8xf32>
    %55 = math.exp %54 : vector<2x8x8xf32>
    %cst_21 = arith.constant dense<0.000000e+00> : vector<2x8xf32>
    %56 = vector.multi_reduction <add>, %55, %cst_21 [2] : vector<2x8x8xf32> to vector<2x8xf32>
    %57 = vector.shape_cast %56 : vector<2x8xf32> to vector<2x8x1xf32>
    %58 = tpu.reciprocal %57 {approx = true} : vector<2x8x1xf32> -> vector<2x8x1xf32>
    %59 = vector.broadcast %58 : vector<2x8x1xf32> to vector<2x8x8xf32>
    %60 = arith.mulf %55, %59 : vector<2x8x8xf32>
    "tpu.trace_start"() <{level = 10 : i32, message = "bqk,bkd->bqd"}> : () -> ()
    %cst_22 = arith.constant dense<0.000000e+00> : vector<2x8x8xf32>
    %61 = tpu.matmul %60, %44, %cst_22 {dimension_numbers = #tpu.dot_dimension_numbers<[2], [1], [1], [2], [0, 0, 0, 1, 1, 2], [0], [0]>} : vector<2x8x8xf32>, vector<2x8x8xf32>, vector<2x8x8xf32> -> vector<2x8x8xf32>
    "tpu.trace_stop"() : () -> ()
    %c0_23 = arith.constant 0 : index
    %c0_24 = arith.constant 0 : index
    %c8 = arith.constant 8 : index
    %62 = vector.load %arg8[%c0_23, %c0_24, %c8] : memref<2x8x32xf32, #tpu.memory_space<vmem>>, vector<2x8x8xf32>
    tpu.vector_store %arg8[%c0_23, %c0_24, %c8], %61 {strides = array<i32>} : memref<2x8x32xf32, #tpu.memory_space<vmem>>, vector<2x8x8xf32>,
    %63 = vector.extract_strided_slice %17 {offsets = [0, 0, 16], sizes = [2, 8, 8], strides = [1, 1, 1]} : vector<2x8x32xf32> to vector<2x8x8xf32>
    %64 = vector.extract_strided_slice %18 {offsets = [0, 0, 16], sizes = [2, 8, 8], strides = [1, 1, 1]} : vector<2x8x32xf32> to vector<2x8x8xf32>
    %65 = vector.extract_strided_slice %19 {offsets = [0, 0, 16], sizes = [2, 8, 8], strides = [1, 1, 1]} : vector<2x8x32xf32> to vector<2x8x8xf32>
    "tpu.trace_start"() <{level = 10 : i32, message = "bqd,bkd->bqk"}> : () -> ()
    %cst_25 = arith.constant dense<0.000000e+00> : vector<2x8x8xf32>
    %66 = tpu.matmul %63, %64, %cst_25 {dimension_numbers = #tpu.dot_dimension_numbers<[2], [2], [1], [1], [0, 0, 0, 1, 1, 1], [0], [0]>} : vector<2x8x8xf32>, vector<2x8x8xf32>, vector<2x8x8xf32> -> vector<2x8x8xf32>
    "tpu.trace_stop"() : () -> ()
    %cst_26 = arith.constant 0.353553385 : f32
    %67 = vector.broadcast %cst_26 : f32 to vector<2x8x8xf32>
    %68 = arith.mulf %66, %67 : vector<2x8x8xf32>
    %69 = vector.shape_cast %20 : vector<8x8xf32> to vector<1x8x8xf32>
    %70 = vector.broadcast %69 : vector<1x8x8xf32> to vector<2x8x8xf32>
    %71 = arith.addf %68, %70 : vector<2x8x8xf32>
    %cst_27 = arith.constant dense<0xFF800000> : vector<2x8xf32>
    %72 = vector.multi_reduction <maximumf>, %71, %cst_27 [2] : vector<2x8x8xf32> to vector<2x8xf32>
    %73 = vector.shape_cast %72 : vector<2x8xf32> to vector<2x8x1xf32>
    %74 = vector.broadcast %73 : vector<2x8x1xf32> to vector<2x8x8xf32>
    %75 = arith.subf %71, %74 : vector<2x8x8xf32>
    %76 = math.exp %75 : vector<2x8x8xf32>
    %cst_28 = arith.constant dense<0.000000e+00> : vector<2x8xf32>
    %77 = vector.multi_reduction <add>, %76, %cst_28 [2] : vector<2x8x8xf32> to vector<2x8xf32>
    %78 = vector.shape_cast %77 : vector<2x8xf32> to vector<2x8x1xf32>
    %79 = tpu.reciprocal %78 {approx = true} : vector<2x8x1xf32> -> vector<2x8x1xf32>
    %80 = vector.broadcast %79 : vector<2x8x1xf32> to vector<2x8x8xf32>
    %81 = arith.mulf %76, %80 : vector<2x8x8xf32>
    "tpu.trace_start"() <{level = 10 : i32, message = "bqk,bkd->bqd"}> : () -> ()
    %cst_29 = arith.constant dense<0.000000e+00> : vector<2x8x8xf32>
    %82 = tpu.matmul %81, %65, %cst_29 {dimension_numbers = #tpu.dot_dimension_numbers<[2], [1], [1], [2], [0, 0, 0, 1, 1, 2], [0], [0]>} : vector<2x8x8xf32>, vector<2x8x8xf32>, vector<2x8x8xf32> -> vector<2x8x8xf32>
    "tpu.trace_stop"() : () -> ()
    %c0_30 = arith.constant 0 : index
    %c0_31 = arith.constant 0 : index
    %c16 = arith.constant 16 : index
    %83 = vector.load %arg8[%c0_30, %c0_31, %c16] : memref<2x8x32xf32, #tpu.memory_space<vmem>>, vector<2x8x8xf32>
    tpu.vector_store %arg8[%c0_30, %c0_31, %c16], %82 {strides = array<i32>} : memref<2x8x32xf32, #tpu.memory_space<vmem>>, vector<2x8x8xf32>,
    %84 = vector.extract_strided_slice %17 {offsets = [0, 0, 24], sizes = [2, 8, 8], strides = [1, 1, 1]} : vector<2x8x32xf32> to vector<2x8x8xf32>
    %85 = vector.extract_strided_slice %18 {offsets = [0, 0, 24], sizes = [2, 8, 8], strides = [1, 1, 1]} : vector<2x8x32xf32> to vector<2x8x8xf32>
    %86 = vector.extract_strided_slice %19 {offsets = [0, 0, 24], sizes = [2, 8, 8], strides = [1, 1, 1]} : vector<2x8x32xf32> to vector<2x8x8xf32>
    "tpu.trace_start"() <{level = 10 : i32, message = "bqd,bkd->bqk"}> : () -> ()
    %cst_32 = arith.constant dense<0.000000e+00> : vector<2x8x8xf32>
    %87 = tpu.matmul %84, %85, %cst_32 {dimension_numbers = #tpu.dot_dimension_numbers<[2], [2], [1], [1], [0, 0, 0, 1, 1, 1], [0], [0]>} : vector<2x8x8xf32>, vector<2x8x8xf32>, vector<2x8x8xf32> -> vector<2x8x8xf32>
    "tpu.trace_stop"() : () -> ()
    %cst_33 = arith.constant 0.353553385 : f32
    %88 = vector.broadcast %cst_33 : f32 to vector<2x8x8xf32>
    %89 = arith.mulf %87, %88 : vector<2x8x8xf32>
    %90 = vector.shape_cast %20 : vector<8x8xf32> to vector<1x8x8xf32>
    %91 = vector.broadcast %90 : vector<1x8x8xf32> to vector<2x8x8xf32>
    %92 = arith.addf %89, %91 : vector<2x8x8xf32>
    %cst_34 = arith.constant dense<0xFF800000> : vector<2x8xf32>
    %93 = vector.multi_reduction <maximumf>, %92, %cst_34 [2] : vector<2x8x8xf32> to vector<2x8xf32>
    %94 = vector.shape_cast %93 : vector<2x8xf32> to vector<2x8x1xf32>
    %95 = vector.broadcast %94 : vector<2x8x1xf32> to vector<2x8x8xf32>
    %96 = arith.subf %92, %95 : vector<2x8x8xf32>
    %97 = math.exp %96 : vector<2x8x8xf32>
    %cst_35 = arith.constant dense<0.000000e+00> : vector<2x8xf32>
    %98 = vector.multi_reduction <add>, %97, %cst_35 [2] : vector<2x8x8xf32> to vector<2x8xf32>
    %99 = vector.shape_cast %98 : vector<2x8xf32> to vector<2x8x1xf32>
    %100 = tpu.reciprocal %99 {approx = true} : vector<2x8x1xf32> -> vector<2x8x1xf32>
    %101 = vector.broadcast %100 : vector<2x8x1xf32> to vector<2x8x8xf32>
    %102 = arith.mulf %97, %101 : vector<2x8x8xf32>
    "tpu.trace_start"() <{level = 10 : i32, message = "bqk,bkd->bqd"}> : () -> ()
    %cst_36 = arith.constant dense<0.000000e+00> : vector<2x8x8xf32>
    %103 = tpu.matmul %102, %86, %cst_36 {dimension_numbers = #tpu.dot_dimension_numbers<[2], [1], [1], [2], [0, 0, 0, 1, 1, 2], [0], [0]>} : vector<2x8x8xf32>, vector<2x8x8xf32>, vector<2x8x8xf32> -> vector<2x8x8xf32>
    "tpu.trace_stop"() : () -> ()
    %c0_37 = arith.constant 0 : index
    %c0_38 = arith.constant 0 : index
    %c24 = arith.constant 24 : index
    %104 = vector.load %arg8[%c0_37, %c0_38, %c24] : memref<2x8x32xf32, #tpu.memory_space<vmem>>, vector<2x8x8xf32>
    tpu.vector_store %arg8[%c0_37, %c0_38, %c24], %103 {strides = array<i32>} : memref<2x8x32xf32, #tpu.memory_space<vmem>>, vector<2x8x8xf32>,
    %c0_39 = arith.constant 0 : index
    %c0_40 = arith.constant 0 : index
    %c0_41 = arith.constant 0 : index
    %105 = vector.load %arg8[%c0_39, %c0_40, %c0_41] : memref<2x8x32xf32, #tpu.memory_space<vmem>>, vector<2x8x32xf32>
    %106 = vector.shape_cast %105 : vector<2x8x32xf32> to vector<16x32xf32>
    %c0_42 = arith.constant 0 : index
    %c0_43 = arith.constant 0 : index
    %107 = vector.load %arg3[%c0_42, %c0_43] : memref<32x32xf32, #tpu.memory_space<vmem>>, vector<32x32xf32>
    %cst_44 = arith.constant dense<0.000000e+00> : vector<16x32xf32>
    %108 = tpu.matmul %106, %107, %cst_44 {dimension_numbers = #tpu.dot_dimension_numbers<[1], [0], [0], [1], [0, 0, 1, 1], [], []>} : vector<16x32xf32>, vector<32x32xf32>, vector<16x32xf32> -> vector<16x32xf32>
    %109 = vector.shape_cast %108 : vector<16x32xf32> to vector<2x8x32xf32>
    %c0_45 = arith.constant 0 : index
    %c0_46 = arith.constant 0 : index
    %c0_47 = arith.constant 0 : index
    %110 = vector.load %arg7[%c0_45, %c0_46, %c0_47] : memref<2x8x32xf32, #tpu.memory_space<vmem>>, vector<2x8x32xf32>
    tpu.vector_store %arg7[%c0_45, %c0_46, %c0_47], %109 {strides = array<i32>} : memref<2x8x32xf32, #tpu.memory_space<vmem>>, vector<2x8x32xf32>,
    return
  }
  func.func @transform_0(%arg0: i32) -> (i32, i32, i32) {
    %c0_i32 = arith.constant 0 : i32
    %c0_i32_0 = arith.constant 0 : i32
    %c0_i32_1 = arith.constant 0 : i32
    return %arg0, %c0_i32, %c0_i32_0 : i32, i32, i32
  }
  func.func @transform_1(%arg0: i32) -> (i32, i32) {
    %c0_i32 = arith.constant 0 : i32
    %c0_i32_0 = arith.constant 0 : i32
    %c0_i32_1 = arith.constant 0 : i32
    return %c0_i32, %c0_i32_0 : i32, i32
  }
  func.func @transform_2(%arg0: i32) -> (i32, i32) {
    %c0_i32 = arith.constant 0 : i32
    %c0_i32_0 = arith.constant 0 : i32
    %c0_i32_1 = arith.constant 0 : i32
    return %c0_i32, %c0_i32_0 : i32, i32
  }
  func.func @transform_3(%arg0: i32) -> (i32, i32) {
    %c0_i32 = arith.constant 0 : i32
    %c0_i32_0 = arith.constant 0 : i32
    %c0_i32_1 = arith.constant 0 : i32
    return %c0_i32, %c0_i32_0 : i32, i32
  }
  func.func @transform_4(%arg0: i32) -> (i32, i32) {
    %c0_i32 = arith.constant 0 : i32
    %c0_i32_0 = arith.constant 0 : i32
    %c0_i32_1 = arith.constant 0 : i32
    return %c0_i32, %c0_i32_0 : i32, i32
  }
  func.func @transform_5(%arg0: i32) -> (i32, i32) {
    %c0_i32 = arith.constant 0 : i32
    %c0_i32_0 = arith.constant 0 : i32
    %c0_i32_1 = arith.constant 0 : i32
    return %c0_i32, %c0_i32_0 : i32, i32
  }
  func.func @transform_6(%arg0: i32) -> (i32, i32, i32) {
    %c0_i32 = arith.constant 0 : i32
    %c0_i32_0 = arith.constant 0 : i32
    %c0_i32_1 = arith.constant 0 : i32
    return %arg0, %c0_i32, %c0_i32_0 : i32, i32, i32
  }
}

</mosaic_0001>

<llo_original>
// kernel: tpu_custom_call.1
$region0: #{tpu_custom_call.1}
  #allocation0 [shape = 'u32[]', space=smem, size = 0x4, offset = 0x4, fixed_abs, tag = 'smem constant byte address 0x4 - core index']
  #allocation1 [shape = 'u32[72,128]{1,0:T(1,128)}', space=vmem, size = 0x9000, scoped, tag = 'internal scratch']
  #allocation2 [shape = 'f32[2,8,32]{2,1,0:T(8,128)}', space=vmem, size = 0x2000, scoped, tag = 'scratch operand']
  %s0 = inlined_call_operand.hbm [shape: f32[2,8,32], index: 0, kind: input, shape index: {}]
  %s1 = inlined_call_operand.hbm [shape: f32[32,160], index: 1, kind: input, shape index: {}]
  %s2 = inlined_call_operand.hbm [shape: f32[32,32], index: 2, kind: input, shape index: {}]
  %s3 = inlined_call_operand.hbm [shape: f32[16,32], index: 3, kind: input, shape index: {}]
  %s4 = inlined_call_operand.hbm [shape: f32[16,32], index: 4, kind: input, shape index: {}]
  %s5 = inlined_call_operand.hbm [shape: f32[8,8], index: 5, kind: input, shape index: {}]
  %s6 = inlined_call_operand.hbm [shape: f32[2,8,32], index: 6, kind: output, shape index: {}]
  %s7 = sld [smem:[#allocation0]]
  $region58: #{tpu_custom_call.1} parent=0
    _
  %s9 = ssub.s32 1, %s7
  %s10 = scalar_select 0, %s9, %s7
  $region1: #{tpu_custom_call.1} parent=0
    #allocation3 [shape = 'u8[8192]{0}', space=vmem, size = 0x2000, scoped, tag = 'input window, operand 0, single buffered']
    #allocation4 [shape = 's32[1]{0}', space=sflag, size = 0x4, scoped, tag = 'scoped memory for tpu_custom_call.1']
    #allocation5 [shape = 's32[1]{0}', space=sflag, size = 0x4, scoped, tag = 'scoped memory for tpu_custom_call.1']
    #allocation6 [shape = 'u8[32768]{0}', space=vmem, size = 0x8000, scoped, tag = 'input window, operand 1, single buffered']
    #allocation7 [shape = 's32[1]{0}', space=sflag, size = 0x4, scoped, tag = 'scoped memory for tpu_custom_call.1']
    #allocation8 [shape = 'u8[16384]{0}', space=vmem, size = 0x4000, scoped, tag = 'input window, operand 2, single buffered']
    #allocation9 [shape = 'u8[8192]{0}', space=vmem, size = 0x2000, scoped, tag = 'input window, operand 3, single buffered']
    #allocation10 [shape = 's32[1]{0}', space=sflag, size = 0x4, scoped, tag = 'scoped memory for tpu_custom_call.1']
    #allocation11 [shape = 'u8[8192]{0}', space=vmem, size = 0x2000, scoped, tag = 'input window, operand 4, single buffered']
    #allocation12 [shape = 'u8[4096]{0}', space=vmem, size = 0x1000, scoped, tag = 'input window, operand 5, single buffered']
    #allocation13 [shape = 's32[1]{0}', space=sflag, size = 0x4, scoped, tag = 'scoped memory for tpu_custom_call.1']
    #allocation14 [shape = 'u8[8192]{0}', space=vmem, size = 0x2000, scoped, tag = 'output window, operand 0, single buffered']
    %11 = vsyncpa [#allocation4], 0
    %12 = vsyncpa [#allocation7], 0
    %13 = vsyncpa [#allocation10], 0
    %14 = vsyncpa [#allocation13], 0
    %15 = vsyncpa [#allocation5], 0
    // Predicated region
    $region2: #{tpu_custom_call.1} parent=1 // pred_check
      _
    $region3: #{tpu_custom_call.1} parent=1 // pred_check_branch
      %17 = sbr.rel (0) target = $region5
    $region4: #{tpu_custom_call.1} parent=1 // pred_region
      %19 = vsyncadd [#allocation4], 0
      %s20 = sshll.u32 %s0, 4
      %s21 = int_to_ptr.hbm [resolvable:$true] %s20
      %s22 = sshll.u32 [#allocation3], 4
      %s23 = int_to_ptr.vmem [resolvable:$true] %s22
      %28 = dma.hbm_to_vmem [thread:$0]  %s21, 256, %s23, [#allocation4], 128, 128, 8
    $region5: #{tpu_custom_call.1} parent=1 // pred_fallthru
      _
    // Predicated region
    $region6: #{tpu_custom_call.1} parent=1 // pred_check
      _
    $region7: #{tpu_custom_call.1} parent=1 // pred_check_branch
      %30 = sbr.rel (0) target = $region9
    $region8: #{tpu_custom_call.1} parent=1 // pred_region
      %32 = vsyncadd [#allocation7], 0
      %s33 = sshll.u32 %s1, 4
      %s34 = int_to_ptr.hbm [resolvable:$true] %s33
      %s35 = sshll.u32 [#allocation6], 4
      %s36 = int_to_ptr.vmem [resolvable:$true] %s35
      %41 = dma.hbm_to_vmem [thread:$0]  %s34, 1024, %s36, [#allocation7], 256, 256, 16
    $region9: #{tpu_custom_call.1} parent=1 // pred_fallthru
      _
    // Predicated region
    $region10: #{tpu_custom_call.1} parent=1 // pred_check
      _
    $region11: #{tpu_custom_call.1} parent=1 // pred_check_branch
      %43 = sbr.rel (0) target = $region13
    $region12: #{tpu_custom_call.1} parent=1 // pred_region
      %45 = vsyncadd [#allocation7], 0
      %s46 = sshll.u32 %s2, 4
      %s47 = int_to_ptr.hbm [resolvable:$true] %s46
      %s48 = sshll.u32 [#allocation8], 4
      %s49 = int_to_ptr.vmem [resolvable:$true] %s48
      %54 = dma.hbm_to_vmem [thread:$0]  %s47, 512, %s49, [#allocation7], 128, 128, 8
    $region13: #{tpu_custom_call.1} parent=1 // pred_fallthru
      _
    // Predicated region
    $region14: #{tpu_custom_call.1} parent=1 // pred_check
      _
    $region15: #{tpu_custom_call.1} parent=1 // pred_check_branch
      %56 = sbr.rel (0) target = $region17
    $region16: #{tpu_custom_call.1} parent=1 // pred_region
      %58 = vsyncadd [#allocation10], 0
      %s59 = sshll.u32 %s3, 4
      %s60 = int_to_ptr.hbm [resolvable:$true] %s59
      %s61 = sshll.u32 [#allocation9], 4
      %s62 = int_to_ptr.vmem [resolvable:$true] %s61
      %67 = dma.hbm_to_vmem [thread:$0]  %s60, 256, %s62, [#allocation10], 128, 128, 8
    $region17: #{tpu_custom_call.1} parent=1 // pred_fallthru
      _
    // Predicated region
    $region18: #{tpu_custom_call.1} parent=1 // pred_check
      _
    $region19: #{tpu_custom_call.1} parent=1 // pred_check_branch
      %69 = sbr.rel (0) target = $region21
    $region20: #{tpu_custom_call.1} parent=1 // pred_region
      %71 = vsyncadd [#allocation10], 0
      %s72 = sshll.u32 %s4, 4
      %s73 = int_to_ptr.hbm [resolvable:$true] %s72
      %s74 = sshll.u32 [#allocation11], 4
      %s75 = int_to_ptr.vmem [resolvable:$true] %s74
      %80 = dma.hbm_to_vmem [thread:$0]  %s73, 256, %s75, [#allocation10], 128, 128, 8
    $region21: #{tpu_custom_call.1} parent=1 // pred_fallthru
      _
    // Predicated region
    $region22: #{tpu_custom_call.1} parent=1 // pred_check
      _
    $region23: #{tpu_custom_call.1} parent=1 // pred_check_branch
      %82 = sbr.rel (0) target = $region25
    $region24: #{tpu_custom_call.1} parent=1 // pred_region
      %84 = vsyncadd [#allocation13], 0
      %s86 = sshll.u32 %s5, 4
      %s87 = int_to_ptr.hbm [resolvable:$true] %s86
      %s88 = sshll.u32 [#allocation12], 4
      %s89 = int_to_ptr.vmem [resolvable:$true] %s88
      %91 = dma.hbm_to_vmem [thread:$0]  %s87, 128, %s89, [#allocation13]
    $region25: #{tpu_custom_call.1} parent=1 // pred_fallthru
      _
    // Predicated region
    $region26: #{tpu_custom_call.1} parent=1 // pred_check
      _
    $region27: #{tpu_custom_call.1} parent=1 // pred_check_branch
      %93 = sbr.rel (0) target = $region29
    $region28: #{tpu_custom_call.1} parent=1 // pred_region
      %95 = dma.done [#allocation4], 256
    $region29: #{tpu_custom_call.1} parent=1 // pred_fallthru
      _
    // Predicated region
    $region30: #{tpu_custom_call.1} parent=1 // pred_check
      _
    $region31: #{tpu_custom_call.1} parent=1 // pred_check_branch
      %97 = sbr.rel (0) target = $region33
    $region32: #{tpu_custom_call.1} parent=1 // pred_region
      %99 = dma.done [#allocation7], 1024
    $region33: #{tpu_custom_call.1} parent=1 // pred_fallthru
      _
    // Predicated region
    $region34: #{tpu_custom_call.1} parent=1 // pred_check
      _
    $region35: #{tpu_custom_call.1} parent=1 // pred_check_branch
      %101 = sbr.rel (0) target = $region37
    $region36: #{tpu_custom_call.1} parent=1 // pred_region
      %103 = dma.done [#allocation7], 512
    $region37: #{tpu_custom_call.1} parent=1 // pred_fallthru
      _
    // Predicated region
    $region38: #{tpu_custom_call.1} parent=1 // pred_check
      _
    $region39: #{tpu_custom_call.1} parent=1 // pred_check_branch
      %105 = sbr.rel (0) target = $region41
    $region40: #{tpu_custom_call.1} parent=1 // pred_region
      %107 = dma.done [#allocation10], 256
    $region41: #{tpu_custom_call.1} parent=1 // pred_fallthru
      _
    // Predicated region
    $region42: #{tpu_custom_call.1} parent=1 // pred_check
      _
    $region43: #{tpu_custom_call.1} parent=1 // pred_check_branch
      %109 = sbr.rel (0) target = $region45
    $region44: #{tpu_custom_call.1} parent=1 // pred_region
      %111 = dma.done [#allocation10], 256
    $region45: #{tpu_custom_call.1} parent=1 // pred_fallthru
      _
    // Predicated region
    $region46: #{tpu_custom_call.1} parent=1 // pred_check
      _
    $region47: #{tpu_custom_call.1} parent=1 // pred_check_branch
      %113 = sbr.rel (0) target = $region49
    $region48: #{tpu_custom_call.1} parent=1 // pred_region
      %115 = dma.done [#allocation13], 128
    $region49: #{tpu_custom_call.1} parent=1 // pred_fallthru
      _
    %v116 = vld [vmem:[#allocation3] sm:$0xff]
    %v117 = vld [vmem:[#allocation3 + $0x8] sm:$0xff]
    %v118 = vld [vmem:[#allocation6] sm:$0xff]
    %v119 = vld [vmem:[#allocation6 + $0x8] sm:$0xff]
    %v120 = vld [vmem:[#allocation6 + $0x10] sm:$0xff]
    %v121 = vld [vmem:[#allocation6 + $0x18] sm:$0xff]
    %v122 = vld [vmem:[#allocation6 + $0x20] sm:$0xff]
    %v123 = vld [vmem:[#allocation6 + $0x28] sm:$0xff]
    %v124 = vld [vmem:[#allocation6 + $0x30] sm:$0xff]
    %v125 = vld [vmem:[#allocation6 + $0x38] sm:$0xff]
    %vm126 = vcmask 261120
    %v128 = vsel %vm126, %v116, 0
    %v131 = vsel %vm126, %v117, 0
    %133 = vmatpush.msra.mxu0 0.0
    %134 = vmatpush.msra.mxu0 0.0
    %135 = vmatpush.msra.mxu0 0.0
    %136 = vmatpush.msra.mxu0 0.0
    %137 = vmatpush.msra.mxu0 0.0
    %138 = vmatpush.msra.mxu0 0.0
    %139 = vmatpush.msra.mxu0 0.0
    %140 = vmatpush.msra.mxu0 0.0
    %141 = vmatpush.msra.mxu0 0.0
    %142 = vmatpush.msra.mxu0 0.0
    %143 = vmatpush.msra.mxu0 0.0
    %144 = vmatpush.msra.mxu0 0.0
    %145 = vmatpush.msra.mxu0 %v124
    %146 = vmatpush.msra.mxu0 %v122
    %147 = vmatpush.msra.mxu0 %v120
    %148 = vmatpush.msra.mxu0 %v118
    %149 = vmatmul.f32.gmra.mxu0 %v128
    %v150 = vpop.f32.mrf.mxu0
    %v151 = vadd.f32 0.0, %v150
    %152 = vmatmul.f32.gmra.mxu0 %v131
    %v153 = vpop.f32.mrf.mxu0
    %v154 = vadd.f32 0.0, %v153
    %155 = vdwg.mxu0
    %156 = vmatpush.msra.mxu0 0.0
    %157 = vmatpush.msra.mxu0 0.0
    %158 = vmatpush.msra.mxu0 0.0
    %159 = vmatpush.msra.mxu0 0.0
    %160 = vmatpush.msra.mxu0 0.0
    %161 = vmatpush.msra.mxu0 0.0
    %162 = vmatpush.msra.mxu0 0.0
    %163 = vmatpush.msra.mxu0 0.0
    %164 = vmatpush.msra.mxu0 0.0
    %165 = vmatpush.msra.mxu0 0.0
    %166 = vmatpush.msra.mxu0 0.0
    %167 = vmatpush.msra.mxu0 0.0
    %168 = vmatpush.msra.mxu0 %v125
    %169 = vmatpush.msra.mxu0 %v123
    %170 = vmatpush.msra.mxu0 %v121
    %171 = vmatpush.msra.mxu0 %v119
    %172 = vmatmul.f32.gmra.mxu0 %v128
    %v173 = vpop.f32.mrf.mxu0
    %v174 = vadd.f32 0.0, %v173
    %175 = vmatmul.f32.gmra.mxu0 %v131
    %v176 = vpop.f32.mrf.mxu0
    %v177 = vadd.f32 0.0, %v176
    %178 = vdwg.mxu0
    %v179 = vld [vmem:[#allocation11] sm:$0xff]
    %v180 = vld [vmem:[#allocation11 + $0x8] sm:$0xff]
    %v181 = vld [vmem:[#allocation9] sm:$0xff]
    %v182 = vld [vmem:[#allocation9 + $0x8] sm:$0xff]
    %v183 = vmul.f32 %v151, %v179
    %v184 = vmul.f32 %v154, %v180
    %187 = vrot.lane.b32.xlu0 %v181, 96
    %v188 = vpop.permute.xlu0 %187
    %189 = vrot.lane.b32.xlu0 %v182, 96
    %v190 = vpop.permute.xlu0 %189
    %v193 = vmul.f32 %v151, %v188
    %v194 = vmul.f32 %v154, %v190
    %197 = vrot.lane.b32.xlu0 %v193, 32
    %v198 = vpop.permute.xlu0 %197
    %199 = vrot.lane.b32.xlu0 %v194, 32
    %v200 = vpop.permute.xlu0 %199
    %v203 = vadd.f32 %v183, %v198
    %v204 = vadd.f32 %v184, %v200
    %207 = vrot.lane.b32.xlu0 %v179, 32
    %v208 = vpop.permute.xlu0 %207
    %209 = vrot.lane.b32.xlu0 %v180, 32
    %v210 = vpop.permute.xlu0 %209
    %v213 = vmul.f32 %v151, %v208
    %v214 = vmul.f32 %v154, %v210
    %v215 = vmul.f32 %v174, %v181
    %v216 = vmul.f32 %v177, %v182
    %219 = vrot.lane.b32.xlu0 %v215, 32
    %v220 = vpop.permute.xlu0 %219
    %221 = vrot.lane.b32.xlu0 %v216, 32
    %v222 = vpop.permute.xlu0 %221
    %v225 = vadd.f32 %v213, %v220
    %v226 = vadd.f32 %v214, %v222
    %v227 = vld [vmem:[#allocation12] sm:$0xff]
    %229 = vrot.lane.b32.xlu0 %v225, 96
    %v230 = vpop.permute.xlu0 %229
    %vm231 = vcmask 64512
    %v233 = vsel %vm231, %v203, 0
    %v235 = vsel %vm231, %v230, 0
    %237 = vmatpush.xpose.msra.mxu0 0.0
    %238 = vmatpush.xpose.msra.mxu0 0.0
    %239 = vmatpush.xpose.msra.mxu0 0.0
    %240 = vmatpush.xpose.msra.mxu0 0.0
    %241 = vmatpush.xpose.msra.mxu0 0.0
    %242 = vmatpush.xpose.msra.mxu0 0.0
    %243 = vmatpush.xpose.msra.mxu0 0.0
    %244 = vmatpush.xpose.msra.mxu0 0.0
    %245 = vmatpush.xpose.msra.mxu0 0.0
    %246 = vmatpush.xpose.msra.mxu0 0.0
    %247 = vmatpush.xpose.msra.mxu0 0.0
    %248 = vmatpush.xpose.msra.mxu0 0.0
    %249 = vmatpush.xpose.msra.mxu0 0.0
    %250 = vmatpush.xpose.msra.mxu0 0.0
    %251 = vmatpush.xpose.msra.mxu0 0.0
    %252 = vmatpush.xpose.msra.mxu0 %v235
    %253 = vmatmul.f32.gmra.mxu0 %v233
    %v254 = vpop.f32.mrf.mxu0
    %v255 = vadd.f32 0.0, %v254
    %256 = vdwg.mxu0
    %258 = vrot.lane.b32.xlu0 %v226, 96
    %v259 = vpop.permute.xlu0 %258
    %v261 = vsel %vm231, %v204, 0
    %v263 = vsel %vm231, %v259, 0
    %265 = vmatpush.xpose.msra.mxu0 0.0
    %266 = vmatpush.xpose.msra.mxu0 0.0
    %267 = vmatpush.xpose.msra.mxu0 0.0
    %268 = vmatpush.xpose.msra.mxu0 0.0
    %269 = vmatpush.xpose.msra.mxu0 0.0
    %270 = vmatpush.xpose.msra.mxu0 0.0
    %271 = vmatpush.xpose.msra.mxu0 0.0
    %272 = vmatpush.xpose.msra.mxu0 0.0
    %273 = vmatpush.xpose.msra.mxu0 0.0
    %274 = vmatpush.xpose.msra.mxu0 0.0
    %275 = vmatpush.xpose.msra.mxu0 0.0
    %276 = vmatpush.xpose.msra.mxu0 0.0
    %277 = vmatpush.xpose.msra.mxu0 0.0
    %278 = vmatpush.xpose.msra.mxu0 0.0
    %279 = vmatpush.xpose.msra.mxu0 0.0
    %280 = vmatpush.xpose.msra.mxu0 %v263
    %281 = vmatmul.f32.gmra.mxu0 %v261
    %v282 = vpop.f32.mrf.mxu0
    %v283 = vadd.f32 0.0, %v282
    %284 = vdwg.mxu0
    %v285 = vmul.f32 %v255, 0.35355338
    %v286 = vmul.f32 %v283, 0.35355338
    %v287 = vadd.f32 %v285, %v227
    %v288 = vadd.f32 %v286, %v227
    %v289 = vsel %vm231, %v287, -inf
    %290 = vmax.xlane.f32.xlu0 %v289
    %v291 = vpop.xlane.xlu0 %290
    %v292 = vsel %vm231, %v288, -inf
    %293 = vmax.xlane.f32.xlu0 %v292
    %v294 = vpop.xlane.xlu0 %293
    %v295 = vsub.f32 %v287, %v291
    %v296 = vsub.f32 %v288, %v294
    %v297 = vmul.f32 %v295, 1.442695
    %v298 = vpow.pop %v297
    %v299 = vmul.f32 %v296, 1.442695
    %v300 = vpow.pop %v299
    %v301 = vsel %vm231, %v298, 0.0
    %302 = vadd.xlane.f32.xlu0 %v301
    %v303 = vpop.xlane.xlu0 %302
    %v304 = vsel %vm231, %v300, 0.0
    %305 = vadd.xlane.f32.xlu0 %v304
    %v306 = vpop.xlane.xlu0 %305
    %v307 = vrcp.pop %v303
    %v308 = vrcp.pop %v306
    %v309 = vmul.f32 %v298, %v307
    %v310 = vmul.f32 %v300, %v308
    %312 = vrot.lane.b32.xlu0 %v151, 64
    %v313 = vpop.permute.xlu0 %312
    %v316 = vsel %vm231, %v309, 0
    %318 = vmatpush.msra.mxu0 0.0
    %319 = vmatpush.msra.mxu0 0.0
    %320 = vmatpush.msra.mxu0 0.0
    %321 = vmatpush.msra.mxu0 0.0
    %322 = vmatpush.msra.mxu0 0.0
    %323 = vmatpush.msra.mxu0 0.0
    %324 = vmatpush.msra.mxu0 0.0
    %325 = vmatpush.msra.mxu0 0.0
    %326 = vmatpush.msra.mxu0 0.0
    %327 = vmatpush.msra.mxu0 0.0
    %328 = vmatpush.msra.mxu0 0.0
    %329 = vmatpush.msra.mxu0 0.0
    %330 = vmatpush.msra.mxu0 0.0
    %331 = vmatpush.msra.mxu0 0.0
    %332 = vmatpush.msra.mxu0 0.0
    %333 = vmatpush.msra.mxu0 %v313
    %334 = vmatmul.f32.gmra.mxu0 %v316
    %v335 = vpop.f32.mrf.mxu0
    %v336 = vadd.f32 0.0, %v335
    %337 = vdwg.mxu0
    %339 = vrot.lane.b32.xlu0 %v154, 64
    %v340 = vpop.permute.xlu0 %339
    %v343 = vsel %vm231, %v310, 0
    %345 = vmatpush.msra.mxu0 0.0
    %346 = vmatpush.msra.mxu0 0.0
    %347 = vmatpush.msra.mxu0 0.0
    %348 = vmatpush.msra.mxu0 0.0
    %349 = vmatpush.msra.mxu0 0.0
    %350 = vmatpush.msra.mxu0 0.0
    %351 = vmatpush.msra.mxu0 0.0
    %352 = vmatpush.msra.mxu0 0.0
    %353 = vmatpush.msra.mxu0 0.0
    %354 = vmatpush.msra.mxu0 0.0
    %355 = vmatpush.msra.mxu0 0.0
    %356 = vmatpush.msra.mxu0 0.0
    %357 = vmatpush.msra.mxu0 0.0
    %358 = vmatpush.msra.mxu0 0.0
    %359 = vmatpush.msra.mxu0 0.0
    %360 = vmatpush.msra.mxu0 %v340
    %361 = vmatmul.f32.gmra.mxu0 %v343
    %v362 = vpop.f32.mrf.mxu0
    %v363 = vadd.f32 0.0, %v362
    %364 = vdwg.mxu0
    %365 = vst.msk [vmem:[#allocation2] sm:$0xff] %vm231, %v336
    %366 = vst.msk [vmem:[#allocation2 + $0x8] sm:$0xff] %vm231, %v363
    %367 = vrot.lane.b32.xlu0 %v203, 120
    %v368 = vpop.permute.xlu0 %367
    %369 = vrot.lane.b32.xlu0 %v225, 88
    %v370 = vpop.permute.xlu0 %369
    %v371 = vsel %vm231, %v368, 0
    %v373 = vsel %vm231, %v370, 0
    %375 = vmatpush.xpose.msra.mxu0 0.0
    %376 = vmatpush.xpose.msra.mxu0 0.0
    %377 = vmatpush.xpose.msra.mxu0 0.0
    %378 = vmatpush.xpose.msra.mxu0 0.0
    %379 = vmatpush.xpose.msra.mxu0 0.0
    %380 = vmatpush.xpose.msra.mxu0 0.0
    %381 = vmatpush.xpose.msra.mxu0 0.0
    %382 = vmatpush.xpose.msra.mxu0 0.0
    %383 = vmatpush.xpose.msra.mxu0 0.0
    %384 = vmatpush.xpose.msra.mxu0 0.0
    %385 = vmatpush.xpose.msra.mxu0 0.0
    %386 = vmatpush.xpose.msra.mxu0 0.0
    %387 = vmatpush.xpose.msra.mxu0 0.0
    %388 = vmatpush.xpose.msra.mxu0 0.0
    %389 = vmatpush.xpose.msra.mxu0 0.0
    %390 = vmatpush.xpose.msra.mxu0 %v373
    %391 = vmatmul.f32.gmra.mxu0 %v371
    %v392 = vpop.f32.mrf.mxu0
    %v393 = vadd.f32 0.0, %v392
    %394 = vdwg.mxu0
    %395 = vrot.lane.b32.xlu0 %v204, 120
    %v396 = vpop.permute.xlu0 %395
    %397 = vrot.lane.b32.xlu0 %v226, 88
    %v398 = vpop.permute.xlu0 %397
    %v399 = vsel %vm231, %v396, 0
    %v401 = vsel %vm231, %v398, 0
    %403 = vmatpush.xpose.msra.mxu0 0.0
    %404 = vmatpush.xpose.msra.mxu0 0.0
    %405 = vmatpush.xpose.msra.mxu0 0.0
    %406 = vmatpush.xpose.msra.mxu0 0.0
    %407 = vmatpush.xpose.msra.mxu0 0.0
    %408 = vmatpush.xpose.msra.mxu0 0.0
    %409 = vmatpush.xpose.msra.mxu0 0.0
    %410 = vmatpush.xpose.msra.mxu0 0.0
    %411 = vmatpush.xpose.msra.mxu0 0.0
    %412 = vmatpush.xpose.msra.mxu0 0.0
    %413 = vmatpush.xpose.msra.mxu0 0.0
    %414 = vmatpush.xpose.msra.mxu0 0.0
    %415 = vmatpush.xpose.msra.mxu0 0.0
    %416 = vmatpush.xpose.msra.mxu0 0.0
    %417 = vmatpush.xpose.msra.mxu0 0.0
    %418 = vmatpush.xpose.msra.mxu0 %v401
    %419 = vmatmul.f32.gmra.mxu0 %v399
    %v420 = vpop.f32.mrf.mxu0
    %v421 = vadd.f32 0.0, %v420
    %422 = vdwg.mxu0
    %v423 = vmul.f32 %v393, 0.35355338
    %v424 = vmul.f32 %v421, 0.35355338
    %v425 = vadd.f32 %v423, %v227
    %v426 = vadd.f32 %v424, %v227
    %v427 = vsel %vm231, %v425, -inf
    %428 = vmax.xlane.f32.xlu0 %v427
    %v429 = vpop.xlane.xlu0 %428
    %v430 = vsel %vm231, %v426, -inf
    %431 = vmax.xlane.f32.xlu0 %v430
    %v432 = vpop.xlane.xlu0 %431
    %v433 = vsub.f32 %v425, %v429
    %v434 = vsub.f32 %v426, %v432
    %v435 = vmul.f32 %v433, 1.442695
    %v436 = vpow.pop %v435
    %v437 = vmul.f32 %v434, 1.442695
    %v438 = vpow.pop %v437
    %v439 = vsel %vm231, %v436, 0.0
    %440 = vadd.xlane.f32.xlu0 %v439
    %v441 = vpop.xlane.xlu0 %440
    %v442 = vsel %vm231, %v438, 0.0
    %443 = vadd.xlane.f32.xlu0 %v442
    %v444 = vpop.xlane.xlu0 %443
    %v445 = vrcp.pop %v441
    %v446 = vrcp.pop %v444
    %v447 = vmul.f32 %v436, %v445
    %v448 = vmul.f32 %v438, %v446
    %449 = vrot.lane.b32.xlu0 %v151, 56
    %v450 = vpop.permute.xlu0 %449
    %v453 = vsel %vm231, %v447, 0
    %455 = vmatpush.msra.mxu0 0.0
    %456 = vmatpush.msra.mxu0 0.0
    %457 = vmatpush.msra.mxu0 0.0
    %458 = vmatpush.msra.mxu0 0.0
    %459 = vmatpush.msra.mxu0 0.0
    %460 = vmatpush.msra.mxu0 0.0
    %461 = vmatpush.msra.mxu0 0.0
    %462 = vmatpush.msra.mxu0 0.0
    %463 = vmatpush.msra.mxu0 0.0
    %464 = vmatpush.msra.mxu0 0.0
    %465 = vmatpush.msra.mxu0 0.0
    %466 = vmatpush.msra.mxu0 0.0
    %467 = vmatpush.msra.mxu0 0.0
    %468 = vmatpush.msra.mxu0 0.0
    %469 = vmatpush.msra.mxu0 0.0
    %470 = vmatpush.msra.mxu0 %v450
    %471 = vmatmul.f32.gmra.mxu0 %v453
    %v472 = vpop.f32.mrf.mxu0
    %v473 = vadd.f32 0.0, %v472
    %474 = vdwg.mxu0
    %475 = vrot.lane.b32.xlu0 %v154, 56
    %v476 = vpop.permute.xlu0 %475
    %v479 = vsel %vm231, %v448, 0
    %481 = vmatpush.msra.mxu0 0.0
    %482 = vmatpush.msra.mxu0 0.0
    %483 = vmatpush.msra.mxu0 0.0
    %484 = vmatpush.msra.mxu0 0.0
    %485 = vmatpush.msra.mxu0 0.0
    %486 = vmatpush.msra.mxu0 0.0
    %487 = vmatpush.msra.mxu0 0.0
    %488 = vmatpush.msra.mxu0 0.0
    %489 = vmatpush.msra.mxu0 0.0
    %490 = vmatpush.msra.mxu0 0.0
    %491 = vmatpush.msra.mxu0 0.0
    %492 = vmatpush.msra.mxu0 0.0
    %493 = vmatpush.msra.mxu0 0.0
    %494 = vmatpush.msra.mxu0 0.0
    %495 = vmatpush.msra.mxu0 0.0
    %496 = vmatpush.msra.mxu0 %v476
    %497 = vmatmul.f32.gmra.mxu0 %v479
    %v498 = vpop.f32.mrf.mxu0
    %v499 = vadd.f32 0.0, %v498
    %500 = vdwg.mxu0
    %503 = vrot.lane.b32.xlu0 %v473, 8
    %v504 = vpop.permute.xlu0 %503
    %505 = vrot.lane.b32.xlu0 %v499, 8
    %v506 = vpop.permute.xlu0 %505
    %vm509 = vcmask 130112
    %510 = vst.msk [vmem:[#allocation2] sm:$0xff] %vm509, %v504
    %511 = vst.msk [vmem:[#allocation2 + $0x8] sm:$0xff] %vm509, %v506
    %512 = vrot.lane.b32.xlu0 %v203, 112
    %v513 = vpop.permute.xlu0 %512
    %514 = vrot.lane.b32.xlu0 %v225, 80
    %v515 = vpop.permute.xlu0 %514
    %v516 = vsel %vm231, %v513, 0
    %v518 = vsel %vm231, %v515, 0
    %520 = vmatpush.xpose.msra.mxu0 0.0
    %521 = vmatpush.xpose.msra.mxu0 0.0
    %522 = vmatpush.xpose.msra.mxu0 0.0
    %523 = vmatpush.xpose.msra.mxu0 0.0
    %524 = vmatpush.xpose.msra.mxu0 0.0
    %525 = vmatpush.xpose.msra.mxu0 0.0
    %526 = vmatpush.xpose.msra.mxu0 0.0
    %527 = vmatpush.xpose.msra.mxu0 0.0
    %528 = vmatpush.xpose.msra.mxu0 0.0
    %529 = vmatpush.xpose.msra.mxu0 0.0
    %530 = vmatpush.xpose.msra.mxu0 0.0
    %531 = vmatpush.xpose.msra.mxu0 0.0
    %532 = vmatpush.xpose.msra.mxu0 0.0
    %533 = vmatpush.xpose.msra.mxu0 0.0
    %534 = vmatpush.xpose.msra.mxu0 0.0
    %535 = vmatpush.xpose.msra.mxu0 %v518
    %536 = vmatmul.f32.gmra.mxu0 %v516
    %v537 = vpop.f32.mrf.mxu0
    %v538 = vadd.f32 0.0, %v537
    %539 = vdwg.mxu0
    %540 = vrot.lane.b32.xlu0 %v204, 112
    %v541 = vpop.permute.xlu0 %540
    %542 = vrot.lane.b32.xlu0 %v226, 80
    %v543 = vpop.permute.xlu0 %542
    %v544 = vsel %vm231, %v541, 0
    %v546 = vsel %vm231, %v543, 0
    %548 = vmatpush.xpose.msra.mxu0 0.0
    %549 = vmatpush.xpose.msra.mxu0 0.0
    %550 = vmatpush.xpose.msra.mxu0 0.0
    %551 = vmatpush.xpose.msra.mxu0 0.0
    %552 = vmatpush.xpose.msra.mxu0 0.0
    %553 = vmatpush.xpose.msra.mxu0 0.0
    %554 = vmatpush.xpose.msra.mxu0 0.0
    %555 = vmatpush.xpose.msra.mxu0 0.0
    %556 = vmatpush.xpose.msra.mxu0 0.0
    %557 = vmatpush.xpose.msra.mxu0 0.0
    %558 = vmatpush.xpose.msra.mxu0 0.0
    %559 = vmatpush.xpose.msra.mxu0 0.0
    %560 = vmatpush.xpose.msra.mxu0 0.0
    %561 = vmatpush.xpose.msra.mxu0 0.0
    %562 = vmatpush.xpose.msra.mxu0 0.0
    %563 = vmatpush.xpose.msra.mxu0 %v546
    %564 = vmatmul.f32.gmra.mxu0 %v544
    %v565 = vpop.f32.mrf.mxu0
    %v566 = vadd.f32 0.0, %v565
    %567 = vdwg.mxu0
    %v568 = vmul.f32 %v538, 0.35355338
    %v569 = vmul.f32 %v566, 0.35355338
    %v570 = vadd.f32 %v568, %v227
    %v571 = vadd.f32 %v569, %v227
    %v572 = vsel %vm231, %v570, -inf
    %573 = vmax.xlane.f32.xlu0 %v572
    %v574 = vpop.xlane.xlu0 %573
    %v575 = vsel %vm231, %v571, -inf
    %576 = vmax.xlane.f32.xlu0 %v575
    %v577 = vpop.xlane.xlu0 %576
    %v578 = vsub.f32 %v570, %v574
    %v579 = vsub.f32 %v571, %v577
    %v580 = vmul.f32 %v578, 1.442695
    %v581 = vpow.pop %v580
    %v582 = vmul.f32 %v579, 1.442695
    %v583 = vpow.pop %v582
    %v584 = vsel %vm231, %v581, 0.0
    %585 = vadd.xlane.f32.xlu0 %v584
    %v586 = vpop.xlane.xlu0 %585
    %v587 = vsel %vm231, %v583, 0.0
    %588 = vadd.xlane.f32.xlu0 %v587
    %v589 = vpop.xlane.xlu0 %588
    %v590 = vrcp.pop %v586
    %v591 = vrcp.pop %v589
    %v592 = vmul.f32 %v581, %v590
    %v593 = vmul.f32 %v583, %v591
    %594 = vrot.lane.b32.xlu0 %v151, 48
    %v595 = vpop.permute.xlu0 %594
    %v598 = vsel %vm231, %v592, 0
    %600 = vmatpush.msra.mxu0 0.0
    %601 = vmatpush.msra.mxu0 0.0
    %602 = vmatpush.msra.mxu0 0.0
    %603 = vmatpush.msra.mxu0 0.0
    %604 = vmatpush.msra.mxu0 0.0
    %605 = vmatpush.msra.mxu0 0.0
    %606 = vmatpush.msra.mxu0 0.0
    %607 = vmatpush.msra.mxu0 0.0
    %608 = vmatpush.msra.mxu0 0.0
    %609 = vmatpush.msra.mxu0 0.0
    %610 = vmatpush.msra.mxu0 0.0
    %611 = vmatpush.msra.mxu0 0.0
    %612 = vmatpush.msra.mxu0 0.0
    %613 = vmatpush.msra.mxu0 0.0
    %614 = vmatpush.msra.mxu0 0.0
    %615 = vmatpush.msra.mxu0 %v595
    %616 = vmatmul.f32.gmra.mxu0 %v598
    %v617 = vpop.f32.mrf.mxu0
    %v618 = vadd.f32 0.0, %v617
    %619 = vdwg.mxu0
    %620 = vrot.lane.b32.xlu0 %v154, 48
    %v621 = vpop.permute.xlu0 %620
    %v624 = vsel %vm231, %v593, 0
    %626 = vmatpush.msra.mxu0 0.0
    %627 = vmatpush.msra.mxu0 0.0
    %628 = vmatpush.msra.mxu0 0.0
    %629 = vmatpush.msra.mxu0 0.0
    %630 = vmatpush.msra.mxu0 0.0
    %631 = vmatpush.msra.mxu0 0.0
    %632 = vmatpush.msra.mxu0 0.0
    %633 = vmatpush.msra.mxu0 0.0
    %634 = vmatpush.msra.mxu0 0.0
    %635 = vmatpush.msra.mxu0 0.0
    %636 = vmatpush.msra.mxu0 0.0
    %637 = vmatpush.msra.mxu0 0.0
    %638 = vmatpush.msra.mxu0 0.0
    %639 = vmatpush.msra.mxu0 0.0
    %640 = vmatpush.msra.mxu0 0.0
    %641 = vmatpush.msra.mxu0 %v621
    %642 = vmatmul.f32.gmra.mxu0 %v624
    %v643 = vpop.f32.mrf.mxu0
    %v644 = vadd.f32 0.0, %v643
    %645 = vdwg.mxu0
    %648 = vrot.lane.b32.xlu0 %v618, 16
    %v649 = vpop.permute.xlu0 %648
    %650 = vrot.lane.b32.xlu0 %v644, 16
    %v651 = vpop.permute.xlu0 %650
    %vm654 = vcmask 195712
    %655 = vst.msk [vmem:[#allocation2] sm:$0xff] %vm654, %v649
    %656 = vst.msk [vmem:[#allocation2 + $0x8] sm:$0xff] %vm654, %v651
    %657 = vrot.lane.b32.xlu0 %v203, 104
    %v658 = vpop.permute.xlu0 %657
    %659 = vrot.lane.b32.xlu0 %v225, 72
    %v660 = vpop.permute.xlu0 %659
    %v661 = vsel %vm231, %v658, 0
    %v663 = vsel %vm231, %v660, 0
    %665 = vmatpush.xpose.msra.mxu0 0.0
    %666 = vmatpush.xpose.msra.mxu0 0.0
    %667 = vmatpush.xpose.msra.mxu0 0.0
    %668 = vmatpush.xpose.msra.mxu0 0.0
    %669 = vmatpush.xpose.msra.mxu0 0.0
    %670 = vmatpush.xpose.msra.mxu0 0.0
    %671 = vmatpush.xpose.msra.mxu0 0.0
    %672 = vmatpush.xpose.msra.mxu0 0.0
    %673 = vmatpush.xpose.msra.mxu0 0.0
    %674 = vmatpush.xpose.msra.mxu0 0.0
    %675 = vmatpush.xpose.msra.mxu0 0.0
    %676 = vmatpush.xpose.msra.mxu0 0.0
    %677 = vmatpush.xpose.msra.mxu0 0.0
    %678 = vmatpush.xpose.msra.mxu0 0.0
    %679 = vmatpush.xpose.msra.mxu0 0.0
    %680 = vmatpush.xpose.msra.mxu0 %v663
    %681 = vmatmul.f32.gmra.mxu0 %v661
    %v682 = vpop.f32.mrf.mxu0
    %v683 = vadd.f32 0.0, %v682
    %684 = vdwg.mxu0
    %685 = vrot.lane.b32.xlu0 %v204, 104
    %v686 = vpop.permute.xlu0 %685
    %687 = vrot.lane.b32.xlu0 %v226, 72
    %v688 = vpop.permute.xlu0 %687
    %v689 = vsel %vm231, %v686, 0
    %v691 = vsel %vm231, %v688, 0
    %693 = vmatpush.xpose.msra.mxu0 0.0
    %694 = vmatpush.xpose.msra.mxu0 0.0
    %695 = vmatpush.xpose.msra.mxu0 0.0
    %696 = vmatpush.xpose.msra.mxu0 0.0
    %697 = vmatpush.xpose.msra.mxu0 0.0
    %698 = vmatpush.xpose.msra.mxu0 0.0
    %699 = vmatpush.xpose.msra.mxu0 0.0
    %700 = vmatpush.xpose.msra.mxu0 0.0
    %701 = vmatpush.xpose.msra.mxu0 0.0
    %702 = vmatpush.xpose.msra.mxu0 0.0
    %703 = vmatpush.xpose.msra.mxu0 0.0
    %704 = vmatpush.xpose.msra.mxu0 0.0
    %705 = vmatpush.xpose.msra.mxu0 0.0
    %706 = vmatpush.xpose.msra.mxu0 0.0
    %707 = vmatpush.xpose.msra.mxu0 0.0
    %708 = vmatpush.xpose.msra.mxu0 %v691
    %709 = vmatmul.f32.gmra.mxu0 %v689
    %v710 = vpop.f32.mrf.mxu0
    %v711 = vadd.f32 0.0, %v710
    %712 = vdwg.mxu0
    %v713 = vmul.f32 %v683, 0.35355338
    %v714 = vmul.f32 %v711, 0.35355338
    %v715 = vadd.f32 %v713, %v227
    %v716 = vadd.f32 %v714, %v227
    %v717 = vsel %vm231, %v715, -inf
    %718 = vmax.xlane.f32.xlu0 %v717
    %v719 = vpop.xlane.xlu0 %718
    %v720 = vsel %vm231, %v716, -inf
    %721 = vmax.xlane.f32.xlu0 %v720
    %v722 = vpop.xlane.xlu0 %721
    %v723 = vsub.f32 %v715, %v719
    %v724 = vsub.f32 %v716, %v722
    %v725 = vmul.f32 %v723, 1.442695
    %v726 = vpow.pop %v725
    %v727 = vmul.f32 %v724, 1.442695
    %v728 = vpow.pop %v727
    %v729 = vsel %vm231, %v726, 0.0
    %730 = vadd.xlane.f32.xlu0 %v729
    %v731 = vpop.xlane.xlu0 %730
    %v732 = vsel %vm231, %v728, 0.0
    %733 = vadd.xlane.f32.xlu0 %v732
    %v734 = vpop.xlane.xlu0 %733
    %v735 = vrcp.pop %v731
    %v736 = vrcp.pop %v734
    %v737 = vmul.f32 %v726, %v735
    %v738 = vmul.f32 %v728, %v736
    %739 = vrot.lane.b32.xlu0 %v151, 40
    %v740 = vpop.permute.xlu0 %739
    %v743 = vsel %vm231, %v737, 0
    %745 = vmatpush.msra.mxu0 0.0
    %746 = vmatpush.msra.mxu0 0.0
    %747 = vmatpush.msra.mxu0 0.0
    %748 = vmatpush.msra.mxu0 0.0
    %749 = vmatpush.msra.mxu0 0.0
    %750 = vmatpush.msra.mxu0 0.0
    %751 = vmatpush.msra.mxu0 0.0
    %752 = vmatpush.msra.mxu0 0.0
    %753 = vmatpush.msra.mxu0 0.0
    %754 = vmatpush.msra.mxu0 0.0
    %755 = vmatpush.msra.mxu0 0.0
    %756 = vmatpush.msra.mxu0 0.0
    %757 = vmatpush.msra.mxu0 0.0
    %758 = vmatpush.msra.mxu0 0.0
    %759 = vmatpush.msra.mxu0 0.0
    %760 = vmatpush.msra.mxu0 %v740
    %761 = vmatmul.f32.gmra.mxu0 %v743
    %v762 = vpop.f32.mrf.mxu0
    %v763 = vadd.f32 0.0, %v762
    %764 = vdwg.mxu0
    %765 = vrot.lane.b32.xlu0 %v154, 40
    %v766 = vpop.permute.xlu0 %765
    %v769 = vsel %vm231, %v738, 0
    %771 = vmatpush.msra.mxu0 0.0
    %772 = vmatpush.msra.mxu0 0.0
    %773 = vmatpush.msra.mxu0 0.0
    %774 = vmatpush.msra.mxu0 0.0
    %775 = vmatpush.msra.mxu0 0.0
    %776 = vmatpush.msra.mxu0 0.0
    %777 = vmatpush.msra.mxu0 0.0
    %778 = vmatpush.msra.mxu0 0.0
    %779 = vmatpush.msra.mxu0 0.0
    %780 = vmatpush.msra.mxu0 0.0
    %781 = vmatpush.msra.mxu0 0.0
    %782 = vmatpush.msra.mxu0 0.0
    %783 = vmatpush.msra.mxu0 0.0
    %784 = vmatpush.msra.mxu0 0.0
    %785 = vmatpush.msra.mxu0 0.0
    %786 = vmatpush.msra.mxu0 %v766
    %787 = vmatmul.f32.gmra.mxu0 %v769
    %v788 = vpop.f32.mrf.mxu0
    %v789 = vadd.f32 0.0, %v788
    %790 = vdwg.mxu0
    %793 = vrot.lane.b32.xlu0 %v763, 24
    %v794 = vpop.permute.xlu0 %793
    %795 = vrot.lane.b32.xlu0 %v789, 24
    %v796 = vpop.permute.xlu0 %795
    %vm799 = vcmask 261312
    %800 = vst.msk [vmem:[#allocation2] sm:$0xff] %vm799, %v794
    %801 = vst.msk [vmem:[#allocation2 + $0x8] sm:$0xff] %vm799, %v796
    %v802 = vld [vmem:[#allocation2] sm:$0xff]
    %v803 = vld [vmem:[#allocation2 + $0x8] sm:$0xff]
    %v804 = vld [vmem:[#allocation8] sm:$0xff]
    %v805 = vld [vmem:[#allocation8 + $0x8] sm:$0xff]
    %v806 = vld [vmem:[#allocation8 + $0x10] sm:$0xff]
    %v807 = vld [vmem:[#allocation8 + $0x18] sm:$0xff]
    %v809 = vsel %vm126, %v802, 0
    %v812 = vsel %vm126, %v803, 0
    %814 = vmatpush.msra.mxu0 0.0
    %815 = vmatpush.msra.mxu0 0.0
    %816 = vmatpush.msra.mxu0 0.0
    %817 = vmatpush.msra.mxu0 0.0
    %818 = vmatpush.msra.mxu0 0.0
    %819 = vmatpush.msra.mxu0 0.0
    %820 = vmatpush.msra.mxu0 0.0
    %821 = vmatpush.msra.mxu0 0.0
    %822 = vmatpush.msra.mxu0 0.0
    %823 = vmatpush.msra.mxu0 0.0
    %824 = vmatpush.msra.mxu0 0.0
    %825 = vmatpush.msra.mxu0 0.0
    %826 = vmatpush.msra.mxu0 %v807
    %827 = vmatpush.msra.mxu0 %v806
    %828 = vmatpush.msra.mxu0 %v805
    %829 = vmatpush.msra.mxu0 %v804
    %830 = vmatmul.f32.gmra.mxu0 %v809
    %v831 = vpop.f32.mrf.mxu0
    %v832 = vadd.f32 0.0, %v831
    %833 = vmatmul.f32.gmra.mxu0 %v812
    %v834 = vpop.f32.mrf.mxu0
    %v835 = vadd.f32 0.0, %v834
    %836 = vdwg.mxu0
    %837 = vst.msk [vmem:[#allocation14] sm:$0xff] %vm126, %v832
    %838 = vst.msk [vmem:[#allocation14 + $0x8] sm:$0xff] %vm126, %v835
    // Predicated region
    $region50: #{tpu_custom_call.1} parent=1 // pred_check
      _
    $region51: #{tpu_custom_call.1} parent=1 // pred_check_branch
      %840 = sbr.rel (0) target = $region53
    $region52: #{tpu_custom_call.1} parent=1 // pred_region
      %842 = vsyncadd [#allocation5], 0
      %s843 = sshll.u32 [#allocation14], 4
      %s844 = int_to_ptr.vmem [resolvable:$true] %s843
      %s845 = sshll.u32 %s6, 4
      %s846 = int_to_ptr.hbm [resolvable:$true] %s845
      %851 = dma.vmem_to_hbm [thread:$0]  %s844, 256, %s846, [#allocation5], 128, 128, 8
    $region53: #{tpu_custom_call.1} parent=1 // pred_fallthru
      _
    // Predicated region
    $region54: #{tpu_custom_call.1} parent=1 // pred_check
      _
    $region55: #{tpu_custom_call.1} parent=1 // pred_check_branch
      %853 = sbr.rel (0) target = $region57
    $region56: #{tpu_custom_call.1} parent=1 // pred_region
      %855 = dma.done [#allocation5], 256
    $region57: #{tpu_custom_call.1} parent=1 // pred_fallthru
      _
    %856 = vsyncpa [#allocation4], 1
    %857 = vsyncpa [#allocation7], 1
    %858 = vsyncpa [#allocation10], 1
    %859 = vsyncpa [#allocation13], 1
    %860 = vsyncpa [#allocation5], 1

</llo_original>
